<compile_context>
chip_gen: v5e
topology: v5e:2x2
jax: 0.10.0
libtpu: 0.0.40
codegen_flags: <defaults>
</compile_context>

<pallas_src>
import functools
import math

import jax
import jax.numpy as jnp
from jax import lax
from jax.experimental import pallas as pl
from jax.experimental.pallas import tpu as pltpu


def _norm_softmax_kernel(x_ref, o_ref):
    """One (tile_rows, D) block; softmax over the last (lane) axis."""
    x = x_ref[...].astype(jnp.float32)          # f32 math (v5e has no bf16 VPU/EUP path)
    x_max = jnp.max(x, axis=-1, keepdims=True)
    x_max = jnp.nan_to_num(x_max, neginf=0.0)   # torch.nan_to_num(x_max, neginf=0)
    e = jnp.exp(x - x_max)
    denom = jnp.sum(e, axis=-1, keepdims=True) + 1e-7
    inv = pl.reciprocal(denom, approx=False)    # EUP; exact for the 1e-6 tolerance
    o_ref[...] = (e * inv).astype(o_ref.dtype)


def _norm_softmax_packed_kernel(x_ref, o_ref, *, k: int, d: int):
    """One (tile_rows, k*d) block; each physical row holds k logical rows of width d."""
    x = x_ref[...].astype(jnp.float32)
    shape = x.shape
    lane = lax.broadcasted_iota(jnp.int32, shape, len(shape) - 1)
    neg_inf = jnp.float32(-jnp.inf)
    # Segmented max (per logical row), nan/-inf sanitized, broadcast back across the segment.
    x_max = jnp.zeros(shape, jnp.float32)
    for j in range(k):                                        # static unroll, k <= 8
        m = (lane >= j * d) & (lane < (j + 1) * d)
        mj = jnp.max(jnp.where(m, x, neg_inf), axis=-1, keepdims=True)
        mj = jnp.nan_to_num(mj, neginf=0.0)
        x_max = jnp.where(m, mj, x_max)
    e = jnp.exp(x - x_max)
    # Segmented sum -> per-segment reciprocal, broadcast back across the segment.
    inv = jnp.zeros(shape, jnp.float32)
    for j in range(k):
        m = (lane >= j * d) & (lane < (j + 1) * d)
        sj = jnp.sum(jnp.where(m, e, 0.0), axis=-1, keepdims=True) + 1e-7
        inv = jnp.where(m, pl.reciprocal(sj, approx=False), inv)
    o_ref[...] = (e * inv).astype(o_ref.dtype)


def _tpu_vmem_capacity_bytes() -> int:
    try:
        info = pltpu.get_tpu_info()
        cap = getattr(info, "vmem_capacity_bytes", None)
        if cap:
            return int(cap)
    except Exception:
        pass
    return 64 << 20  # conservative (v7x-sized) default if the query is unavailable


def _pick_tile_rows(rows: int, width: int, itemsize: int, row_align: int,
                    target_block_bytes: int, min_blocks: int = 8) -> int:
    """Pick a row-tile: ~target_block_bytes per input block, sublane-aligned, and >= min_blocks
    grid steps when the row count allows it (good load-balance across v7x's two TensorCores)."""
    tr = max(row_align, target_block_bytes // max(1, width * itemsize))
    if rows >= min_blocks * row_align:
        tr = min(tr, max(row_align, rows // min_blocks))
    tr = max(row_align, (tr // row_align) * row_align)
    return int(min(tr, rows))


def norm_softmax(x: jax.Array, *, tile_rows: int | None = None) -> jax.Array:
    """Apply NormSoftmax over the last dimension of x (matches the PyTorch forward)."""
    orig_shape = x.shape
    orig_dtype = x.dtype
    D = int(orig_shape[-1])
    rows = int(math.prod(orig_shape[:-1])) if len(orig_shape) > 1 else 1
    x2 = x.reshape(rows, D)

    itemsize = jnp.dtype(orig_dtype).itemsize
    packing = max(1, 4 // itemsize)              # sublane packing: 8 (f32), 16 (bf16), 32 (i8)
    row_align = 8 * packing

    # Lane-dense packing for small D: pack k logical rows per physical row so the out_spec's
    # last dim is a dense multiple of 128 (unmasked stores).
    k = 128 // math.gcd(D, 128) if D < 128 else 1
    packed = (D < 128) and (D % 8 == 0) and (1 < k <= 8)
    if packed:
        pad = (-rows) % k
        if pad:
            x2 = jnp.pad(x2, ((0, pad), (0, 0)))  # extra copy only when rows % k != 0
        kernel_rows = (rows + pad) // k
        width = k * D
        x2 = x2.reshape(kernel_rows, width)
        kernel = functools.partial(_norm_softmax_packed_kernel, k=k, d=D)
    else:
        kernel_rows, width = rows, D
        kernel = _norm_softmax_kernel

    # Generation-aware block-size and scoped-VMEM budget.
    phys_vmem = _tpu_vmem_capacity_bytes()
    target_block_bytes = (8 << 20) if phys_vmem >= (100 << 20) else (4 << 20)
    scoped_cap = max(32 << 20, min(phys_vmem - (16 << 20), 96 << 20))

    if tile_rows is None:
        tile_rows = _pick_tile_rows(kernel_rows, width, itemsize, row_align, target_block_bytes)
    tile_rows = int(min(tile_rows, kernel_rows))

    def _vmem_need(tr: int) -> int:
        block_bytes = tr * width * itemsize
        f32_tmp = tr * width * 4 * (3 if packed else 2)   # in-kernel f32 temporaries
        return 2 * 2 * block_bytes + f32_tmp              # 2 pipeline bufs x (in + out) + temps

    # Shrink the tile if needed so the scoped-VMEM budget keeps headroom.
    while tile_rows > row_align and _vmem_need(tile_rows) > (scoped_cap * 3) // 4:
        tile_rows = max(row_align, ((tile_rows // 2) // row_align) * row_align)
    vmem_need = _vmem_need(tile_rows)
    vmem_limit = int(min(max(2 * vmem_need, 16 << 20), scoped_cap))
    # TODO(synk): for extreme D (vmem_need > scoped_cap even at the minimum row tile) add a
    # second "arbitrary" grid axis over D with an online-softmax (running max/sum in scratch).

    grid = (pl.cdiv(kernel_rows, tile_rows),)

    n_elem = kernel_rows * width
    cost = pl.CostEstimate(
        flops=(2 * k + 5) * n_elem if packed else 5 * n_elem,
        transcendentals=n_elem,
        bytes_accessed=2 * n_elem * itemsize,
    )

    out = pl.pallas_call(
        kernel,
        out_shape=jax.ShapeDtypeStruct((kernel_rows, width), orig_dtype),
        grid_spec=pltpu.PrefetchScalarGridSpec(
            num_scalar_prefetch=0,
            grid=grid,
            in_specs=[pl.BlockSpec((tile_rows, width), lambda i: (i, 0))],
            out_specs=pl.BlockSpec((tile_rows, width), lambda i: (i, 0)),
        ),
        compiler_params=pltpu.CompilerParams(
            dimension_semantics=("parallel",),
            vmem_limit_bytes=vmem_limit,
        ),
        cost_estimate=cost,
    )(x2)

    if packed:
        out = out.reshape(kernel_rows * k, D)[:rows]
    return out.reshape(orig_shape)


def _reference(x: jax.Array) -> jax.Array:
    xf = x.astype(jnp.float32)
    x_max = jnp.max(xf, axis=-1, keepdims=True)
    x_max = jnp.nan_to_num(x_max, neginf=0.0)
    e = jnp.exp(xf - x_max)
    return (e / (jnp.sum(e, axis=-1, keepdims=True) + 1e-7)).astype(x.dtype)


if __name__ == "__main__":
    # NormSoftmax has no learnable parameters (self.dim is unused in forward).
    key = jax.random.PRNGKey(0)
    k1, k2, k3 = jax.random.split(key, 3)

    # 1) Small-D (packed, lane-dense) path with an all -inf logical row
    #    (exercises nan_to_num(neginf=0)).
    x1 = jax.random.normal(k1, (2, 8, 32), dtype=jnp.float32)
    x1 = x1.at[0, 0, :].set(-jnp.inf)
    y1 = jax.block_until_ready(norm_softmax(x1))
    assert y1.shape == x1.shape and y1.dtype == x1.dtype
    assert jnp.allclose(y1, _reference(x1), atol=1e-6, rtol=1e-6)

    # 2) Small-D packed path where rows % k != 0 (exercises the row-padding branch).
    x2 = jax.random.normal(k2, (3, 5, 32), dtype=jnp.float32)
    y2 = jax.block_until_ready(norm_softmax(x2))
    assert jnp.allclose(y2, _reference(x2), atol=1e-6, rtol=1e-6)

    # 3) D >= 128: plain lane-dense streaming path.
    x3 = jax.random.normal(k3, (2, 4, 256), dtype=jnp.float32)
    y3 = jax.block_until_ready(norm_softmax(x3))
    assert jnp.allclose(y3, _reference(x3), atol=1e-6, rtol=1e-6)

    print("KERNEL_OK")
</pallas_src>

<mosaic_0001>
module attributes {stable_mosaic.version = 11 : i64} {
  func.func @_norm_softmax_packed_kernel(%arg0: i32, %arg1: memref<4x128xf32, #tpu.memory_space<vmem>>, %arg2: memref<4x128xf32, #tpu.memory_space<vmem>>) attributes {dimension_semantics = [#tpu.dimension_semantics<parallel>], iteration_bounds = array<i64: 1>, scalar_prefetch = 0 : i64, scratch_operands = 0 : i64, tpu.core_type = #tpu.core_type<tc>, window_params = [{transform_indices = @transform_0, window_bounds = array<i64: 4, 128>}, {transform_indices = @transform_1, window_bounds = array<i64: 4, 128>}]} {
    %c0 = arith.constant 0 : index
    %c0_0 = arith.constant 0 : index
    %0 = vector.load %arg1[%c0, %c0_0] : memref<4x128xf32, #tpu.memory_space<vmem>>, vector<4x128xf32>
    %1 = tpu.iota {dimensions = array<i32: 1>} : vector<4x128xi32>
    %cst = arith.constant 0.000000e+00 : f32
    %2 = vector.broadcast %cst : f32 to vector<4x128xf32>
    %c0_i32 = arith.constant 0 : i32
    %3 = vector.broadcast %c0_i32 : i32 to vector<4x128xi32>
    %4 = arith.cmpi sge, %1, %3 : vector<4x128xi32>
    %c32_i32 = arith.constant 32 : i32
    %5 = vector.broadcast %c32_i32 : i32 to vector<4x128xi32>
    %6 = arith.cmpi slt, %1, %5 : vector<4x128xi32>
    %7 = arith.andi %4, %6 : vector<4x128xi1>
    %cst_1 = arith.constant 0xFF800000 : f32
    %8 = vector.broadcast %cst_1 : f32 to vector<4x128xf32>
    %9 = arith.select %7, %0, %8 : vector<4x128xi1>, vector<4x128xf32>
    %cst_2 = arith.constant dense<0xFF800000> : vector<4xf32>
    %10 = vector.multi_reduction <maximumf>, %9, %cst_2 [1] : vector<4x128xf32> to vector<4xf32>
    %11 = vector.shape_cast %10 : vector<4xf32> to vector<4x1xf32>
    %cst_3 = arith.constant 0.000000e+00 : f32
    %12 = arith.cmpf one, %11, %11 : vector<4x1xf32>
    %cst_4 = arith.constant 0.000000e+00 : f32
    %13 = vector.broadcast %cst_4 : f32 to vector<4x1xf32>
    %14 = arith.select %12, %13, %11 : vector<4x1xi1>, vector<4x1xf32>
    %cst_5 = arith.constant 0x7F800000 : f32
    %15 = vector.broadcast %cst_5 : f32 to vector<4x1xf32>
    %16 = arith.cmpf oeq, %14, %15 : vector<4x1xf32>
    %cst_6 = arith.constant 3.40282347E+38 : f32
    %17 = vector.broadcast %cst_6 : f32 to vector<4x1xf32>
    %18 = arith.select %16, %17, %14 : vector<4x1xi1>, vector<4x1xf32>
    %cst_7 = arith.constant 0xFF800000 : f32
    %19 = vector.broadcast %cst_7 : f32 to vector<4x1xf32>
    %20 = arith.cmpf oeq, %18, %19 : vector<4x1xf32>
    %21 = vector.broadcast %cst_3 : f32 to vector<4x1xf32>
    %22 = arith.select %20, %21, %18 : vector<4x1xi1>, vector<4x1xf32>
    %23 = vector.shape_cast %22 : vector<4x1xf32> to vector<4x1xf32>
    %24 = vector.broadcast %23 : vector<4x1xf32> to vector<4x128xf32>
    %25 = arith.select %7, %24, %2 : vector<4x128xi1>, vector<4x128xf32>
    %c32_i32_8 = arith.constant 32 : i32
    %26 = vector.broadcast %c32_i32_8 : i32 to vector<4x128xi32>
    %27 = arith.cmpi sge, %1, %26 : vector<4x128xi32>
    %c64_i32 = arith.constant 64 : i32
    %28 = vector.broadcast %c64_i32 : i32 to vector<4x128xi32>
    %29 = arith.cmpi slt, %1, %28 : vector<4x128xi32>
    %30 = arith.andi %27, %29 : vector<4x128xi1>
    %cst_9 = arith.constant 0xFF800000 : f32
    %31 = vector.broadcast %cst_9 : f32 to vector<4x128xf32>
    %32 = arith.select %30, %0, %31 : vector<4x128xi1>, vector<4x128xf32>
    %cst_10 = arith.constant dense<0xFF800000> : vector<4xf32>
    %33 = vector.multi_reduction <maximumf>, %32, %cst_10 [1] : vector<4x128xf32> to vector<4xf32>
    %34 = vector.shape_cast %33 : vector<4xf32> to vector<4x1xf32>
    %cst_11 = arith.constant 0.000000e+00 : f32
    %35 = arith.cmpf one, %34, %34 : vector<4x1xf32>
    %cst_12 = arith.constant 0.000000e+00 : f32
    %36 = vector.broadcast %cst_12 : f32 to vector<4x1xf32>
    %37 = arith.select %35, %36, %34 : vector<4x1xi1>, vector<4x1xf32>
    %cst_13 = arith.constant 0x7F800000 : f32
    %38 = vector.broadcast %cst_13 : f32 to vector<4x1xf32>
    %39 = arith.cmpf oeq, %37, %38 : vector<4x1xf32>
    %cst_14 = arith.constant 3.40282347E+38 : f32
    %40 = vector.broadcast %cst_14 : f32 to vector<4x1xf32>
    %41 = arith.select %39, %40, %37 : vector<4x1xi1>, vector<4x1xf32>
    %cst_15 = arith.constant 0xFF800000 : f32
    %42 = vector.broadcast %cst_15 : f32 to vector<4x1xf32>
    %43 = arith.cmpf oeq, %41, %42 : vector<4x1xf32>
    %44 = vector.broadcast %cst_11 : f32 to vector<4x1xf32>
    %45 = arith.select %43, %44, %41 : vector<4x1xi1>, vector<4x1xf32>
    %46 = vector.shape_cast %45 : vector<4x1xf32> to vector<4x1xf32>
    %47 = vector.broadcast %46 : vector<4x1xf32> to vector<4x128xf32>
    %48 = arith.select %30, %47, %25 : vector<4x128xi1>, vector<4x128xf32>
    %c64_i32_16 = arith.constant 64 : i32
    %49 = vector.broadcast %c64_i32_16 : i32 to vector<4x128xi32>
    %50 = arith.cmpi sge, %1, %49 : vector<4x128xi32>
    %c96_i32 = arith.constant 96 : i32
    %51 = vector.broadcast %c96_i32 : i32 to vector<4x128xi32>
    %52 = arith.cmpi slt, %1, %51 : vector<4x128xi32>
    %53 = arith.andi %50, %52 : vector<4x128xi1>
    %cst_17 = arith.constant 0xFF800000 : f32
    %54 = vector.broadcast %cst_17 : f32 to vector<4x128xf32>
    %55 = arith.select %53, %0, %54 : vector<4x128xi1>, vector<4x128xf32>
    %cst_18 = arith.constant dense<0xFF800000> : vector<4xf32>
    %56 = vector.multi_reduction <maximumf>, %55, %cst_18 [1] : vector<4x128xf32> to vector<4xf32>
    %57 = vector.shape_cast %56 : vector<4xf32> to vector<4x1xf32>
    %cst_19 = arith.constant 0.000000e+00 : f32
    %58 = arith.cmpf one, %57, %57 : vector<4x1xf32>
    %cst_20 = arith.constant 0.000000e+00 : f32
    %59 = vector.broadcast %cst_20 : f32 to vector<4x1xf32>
    %60 = arith.select %58, %59, %57 : vector<4x1xi1>, vector<4x1xf32>
    %cst_21 = arith.constant 0x7F800000 : f32
    %61 = vector.broadcast %cst_21 : f32 to vector<4x1xf32>
    %62 = arith.cmpf oeq, %60, %61 : vector<4x1xf32>
    %cst_22 = arith.constant 3.40282347E+38 : f32
    %63 = vector.broadcast %cst_22 : f32 to vector<4x1xf32>
    %64 = arith.select %62, %63, %60 : vector<4x1xi1>, vector<4x1xf32>
    %cst_23 = arith.constant 0xFF800000 : f32
    %65 = vector.broadcast %cst_23 : f32 to vector<4x1xf32>
    %66 = arith.cmpf oeq, %64, %65 : vector<4x1xf32>
    %67 = vector.broadcast %cst_19 : f32 to vector<4x1xf32>
    %68 = arith.select %66, %67, %64 : vector<4x1xi1>, vector<4x1xf32>
    %69 = vector.shape_cast %68 : vector<4x1xf32> to vector<4x1xf32>
    %70 = vector.broadcast %69 : vector<4x1xf32> to vector<4x128xf32>
    %71 = arith.select %53, %70, %48 : vector<4x128xi1>, vector<4x128xf32>
    %c96_i32_24 = arith.constant 96 : i32
    %72 = vector.broadcast %c96_i32_24 : i32 to vector<4x128xi32>
    %73 = arith.cmpi sge, %1, %72 : vector<4x128xi32>
    %c128_i32 = arith.constant 128 : i32
    %74 = vector.broadcast %c128_i32 : i32 to vector<4x128xi32>
    %75 = arith.cmpi slt, %1, %74 : vector<4x128xi32>
    %76 = arith.andi %73, %75 : vector<4x128xi1>
    %cst_25 = arith.constant 0xFF800000 : f32
    %77 = vector.broadcast %cst_25 : f32 to vector<4x128xf32>
    %78 = arith.select %76, %0, %77 : vector<4x128xi1>, vector<4x128xf32>
    %cst_26 = arith.constant dense<0xFF800000> : vector<4xf32>
    %79 = vector.multi_reduction <maximumf>, %78, %cst_26 [1] : vector<4x128xf32> to vector<4xf32>
    %80 = vector.shape_cast %79 : vector<4xf32> to vector<4x1xf32>
    %cst_27 = arith.constant 0.000000e+00 : f32
    %81 = arith.cmpf one, %80, %80 : vector<4x1xf32>
    %cst_28 = arith.constant 0.000000e+00 : f32
    %82 = vector.broadcast %cst_28 : f32 to vector<4x1xf32>
    %83 = arith.select %81, %82, %80 : vector<4x1xi1>, vector<4x1xf32>
    %cst_29 = arith.constant 0x7F800000 : f32
    %84 = vector.broadcast %cst_29 : f32 to vector<4x1xf32>
    %85 = arith.cmpf oeq, %83, %84 : vector<4x1xf32>
    %cst_30 = arith.constant 3.40282347E+38 : f32
    %86 = vector.broadcast %cst_30 : f32 to vector<4x1xf32>
    %87 = arith.select %85, %86, %83 : vector<4x1xi1>, vector<4x1xf32>
    %cst_31 = arith.constant 0xFF800000 : f32
    %88 = vector.broadcast %cst_31 : f32 to vector<4x1xf32>
    %89 = arith.cmpf oeq, %87, %88 : vector<4x1xf32>
    %90 = vector.broadcast %cst_27 : f32 to vector<4x1xf32>
    %91 = arith.select %89, %90, %87 : vector<4x1xi1>, vector<4x1xf32>
    %92 = vector.shape_cast %91 : vector<4x1xf32> to vector<4x1xf32>
    %93 = vector.broadcast %92 : vector<4x1xf32> to vector<4x128xf32>
    %94 = arith.select %76, %93, %71 : vector<4x128xi1>, vector<4x128xf32>
    %95 = arith.subf %0, %94 : vector<4x128xf32>
    %96 = math.exp %95 : vector<4x128xf32>
    %cst_32 = arith.constant 0.000000e+00 : f32
    %97 = vector.broadcast %cst_32 : f32 to vector<4x128xf32>
    %c0_i32_33 = arith.constant 0 : i32
    %98 = vector.broadcast %c0_i32_33 : i32 to vector<4x128xi32>
    %99 = arith.cmpi sge, %1, %98 : vector<4x128xi32>
    %c32_i32_34 = arith.constant 32 : i32
    %100 = vector.broadcast %c32_i32_34 : i32 to vector<4x128xi32>
    %101 = arith.cmpi slt, %1, %100 : vector<4x128xi32>
    %102 = arith.andi %99, %101 : vector<4x128xi1>
    %cst_35 = arith.constant 0.000000e+00 : f32
    %103 = vector.broadcast %cst_35 : f32 to vector<4x128xf32>
    %104 = arith.select %102, %96, %103 : vector<4x128xi1>, vector<4x128xf32>
    %cst_36 = arith.constant dense<0.000000e+00> : vector<4xf32>
    %105 = vector.multi_reduction <add>, %104, %cst_36 [1] : vector<4x128xf32> to vector<4xf32>
    %106 = vector.shape_cast %105 : vector<4xf32> to vector<4x1xf32>
    %cst_37 = arith.constant 1.000000e-07 : f32
    %107 = vector.broadcast %cst_37 : f32 to vector<4x1xf32>
    %108 = arith.addf %106, %107 : vector<4x1xf32>
    %109 = tpu.reciprocal %108 : vector<4x1xf32> -> vector<4x1xf32>
    %110 = vector.shape_cast %109 : vector<4x1xf32> to vector<4x1xf32>
    %111 = vector.broadcast %110 : vector<4x1xf32> to vector<4x128xf32>
    %112 = arith.select %102, %111, %97 : vector<4x128xi1>, vector<4x128xf32>
    %c32_i32_38 = arith.constant 32 : i32
    %113 = vector.broadcast %c32_i32_38 : i32 to vector<4x128xi32>
    %114 = arith.cmpi sge, %1, %113 : vector<4x128xi32>
    %c64_i32_39 = arith.constant 64 : i32
    %115 = vector.broadcast %c64_i32_39 : i32 to vector<4x128xi32>
    %116 = arith.cmpi slt, %1, %115 : vector<4x128xi32>
    %117 = arith.andi %114, %116 : vector<4x128xi1>
    %cst_40 = arith.constant 0.000000e+00 : f32
    %118 = vector.broadcast %cst_40 : f32 to vector<4x128xf32>
    %119 = arith.select %117, %96, %118 : vector<4x128xi1>, vector<4x128xf32>
    %cst_41 = arith.constant dense<0.000000e+00> : vector<4xf32>
    %120 = vector.multi_reduction <add>, %119, %cst_41 [1] : vector<4x128xf32> to vector<4xf32>
    %121 = vector.shape_cast %120 : vector<4xf32> to vector<4x1xf32>
    %cst_42 = arith.constant 1.000000e-07 : f32
    %122 = vector.broadcast %cst_42 : f32 to vector<4x1xf32>
    %123 = arith.addf %121, %122 : vector<4x1xf32>
    %124 = tpu.reciprocal %123 : vector<4x1xf32> -> vector<4x1xf32>
    %125 = vector.shape_cast %124 : vector<4x1xf32> to vector<4x1xf32>
    %126 = vector.broadcast %125 : vector<4x1xf32> to vector<4x128xf32>
    %127 = arith.select %117, %126, %112 : vector<4x128xi1>, vector<4x128xf32>
    %c64_i32_43 = arith.constant 64 : i32
    %128 = vector.broadcast %c64_i32_43 : i32 to vector<4x128xi32>
    %129 = arith.cmpi sge, %1, %128 : vector<4x128xi32>
    %c96_i32_44 = arith.constant 96 : i32
    %130 = vector.broadcast %c96_i32_44 : i32 to vector<4x128xi32>
    %131 = arith.cmpi slt, %1, %130 : vector<4x128xi32>
    %132 = arith.andi %129, %131 : vector<4x128xi1>
    %cst_45 = arith.constant 0.000000e+00 : f32
    %133 = vector.broadcast %cst_45 : f32 to vector<4x128xf32>
    %134 = arith.select %132, %96, %133 : vector<4x128xi1>, vector<4x128xf32>
    %cst_46 = arith.constant dense<0.000000e+00> : vector<4xf32>
    %135 = vector.multi_reduction <add>, %134, %cst_46 [1] : vector<4x128xf32> to vector<4xf32>
    %136 = vector.shape_cast %135 : vector<4xf32> to vector<4x1xf32>
    %cst_47 = arith.constant 1.000000e-07 : f32
    %137 = vector.broadcast %cst_47 : f32 to vector<4x1xf32>
    %138 = arith.addf %136, %137 : vector<4x1xf32>
    %139 = tpu.reciprocal %138 : vector<4x1xf32> -> vector<4x1xf32>
    %140 = vector.shape_cast %139 : vector<4x1xf32> to vector<4x1xf32>
    %141 = vector.broadcast %140 : vector<4x1xf32> to vector<4x128xf32>
    %142 = arith.select %132, %141, %127 : vector<4x128xi1>, vector<4x128xf32>
    %c96_i32_48 = arith.constant 96 : i32
    %143 = vector.broadcast %c96_i32_48 : i32 to vector<4x128xi32>
    %144 = arith.cmpi sge, %1, %143 : vector<4x128xi32>
    %c128_i32_49 = arith.constant 128 : i32
    %145 = vector.broadcast %c128_i32_49 : i32 to vector<4x128xi32>
    %146 = arith.cmpi slt, %1, %145 : vector<4x128xi32>
    %147 = arith.andi %144, %146 : vector<4x128xi1>
    %cst_50 = arith.constant 0.000000e+00 : f32
    %148 = vector.broadcast %cst_50 : f32 to vector<4x128xf32>
    %149 = arith.select %147, %96, %148 : vector<4x128xi1>, vector<4x128xf32>
    %cst_51 = arith.constant dense<0.000000e+00> : vector<4xf32>
    %150 = vector.multi_reduction <add>, %149, %cst_51 [1] : vector<4x128xf32> to vector<4xf32>
    %151 = vector.shape_cast %150 : vector<4xf32> to vector<4x1xf32>
    %cst_52 = arith.constant 1.000000e-07 : f32
    %152 = vector.broadcast %cst_52 : f32 to vector<4x1xf32>
    %153 = arith.addf %151, %152 : vector<4x1xf32>
    %154 = tpu.reciprocal %153 : vector<4x1xf32> -> vector<4x1xf32>
    %155 = vector.shape_cast %154 : vector<4x1xf32> to vector<4x1xf32>
    %156 = vector.broadcast %155 : vector<4x1xf32> to vector<4x128xf32>
    %157 = arith.select %147, %156, %142 : vector<4x128xi1>, vector<4x128xf32>
    %158 = arith.mulf %96, %157 : vector<4x128xf32>
    %c0_53 = arith.constant 0 : index
    %c0_54 = arith.constant 0 : index
    %159 = vector.load %arg2[%c0_53, %c0_54] : memref<4x128xf32, #tpu.memory_space<vmem>>, vector<4x128xf32>
    tpu.vector_store %arg2[%c0_53, %c0_54], %158 {strides = array<i32>} : memref<4x128xf32, #tpu.memory_space<vmem>>, vector<4x128xf32>,
    return
  }
  func.func @transform_0(%arg0: i32) -> (i32, i32) {
    %c0_i32 = arith.constant 0 : i32
    %c0_i32_0 = arith.constant 0 : i32
    return %arg0, %c0_i32 : i32, i32
  }
  func.func @transform_1(%arg0: i32) -> (i32, i32) {
    %c0_i32 = arith.constant 0 : i32
    %c0_i32_0 = arith.constant 0 : i32
    return %arg0, %c0_i32 : i32, i32
  }
}

</mosaic_0001>

<llo_original>
// kernel: tpu_custom_call.1
$region0: #{tpu_custom_call.1}
  #allocation0 [shape = 'u32[]', space=smem, size = 0x4, offset = 0x4, fixed_abs, tag = 'smem constant byte address 0x4 - core index']
  #allocation1 [shape = 'u32[72,128]{1,0:T(1,128)}', space=vmem, size = 0x9000, scoped, tag = 'internal scratch']
  %s0 = inlined_call_operand.hbm [shape: f32[4,128], index: 0, kind: input, shape index: {}]
  %s1 = inlined_call_operand.hbm [shape: f32[4,128], index: 1, kind: output, shape index: {}]
  %s2 = sld [smem:[#allocation0]]
  $region18: #{tpu_custom_call.1} parent=0
    _
  %s4 = ssub.s32 1, %s2
  %s5 = scalar_select 0, %s4, %s2
  $region1: #{tpu_custom_call.1} parent=0
    #allocation2 [shape = 'u8[2048]{0}', space=vmem, size = 0x800, scoped, tag = 'input window, operand 0, single buffered']
    #allocation3 [shape = 's32[1]{0}', space=sflag, size = 0x4, scoped, tag = 'scoped memory for tpu_custom_call.1']
    #allocation4 [shape = 's32[1]{0}', space=sflag, size = 0x4, scoped, tag = 'scoped memory for tpu_custom_call.1']
    #allocation5 [shape = 'u8[2048]{0}', space=vmem, size = 0x800, scoped, tag = 'output window, operand 0, single buffered']
    %6 = vsyncpa [#allocation3], 0
    %7 = vsyncpa [#allocation4], 0
    // Predicated region
    $region2: #{tpu_custom_call.1} parent=1 // pred_check
      _
    $region3: #{tpu_custom_call.1} parent=1 // pred_check_branch
      %9 = sbr.rel (0) target = $region5
    $region4: #{tpu_custom_call.1} parent=1 // pred_region
      %11 = vsyncadd [#allocation3], 0
      %s13 = sshll.u32 %s0, 4
      %s14 = int_to_ptr.hbm [resolvable:$true] %s13
      %s15 = sshll.u32 [#allocation2], 4
      %s16 = int_to_ptr.vmem [resolvable:$true] %s15
      %18 = dma.hbm_to_vmem [thread:$0]  %s14, 64, %s16, [#allocation3]
    $region5: #{tpu_custom_call.1} parent=1 // pred_fallthru
      _
    // Predicated region
    $region6: #{tpu_custom_call.1} parent=1 // pred_check
      _
    $region7: #{tpu_custom_call.1} parent=1 // pred_check_branch
      %20 = sbr.rel (0) target = $region9
    $region8: #{tpu_custom_call.1} parent=1 // pred_region
      %22 = dma.done [#allocation3], 64
    $region9: #{tpu_custom_call.1} parent=1 // pred_fallthru
      _
    %v23 = vld [vmem:[#allocation2] sm:$0xf]
    %v24 = vlaneseq
    %v25 = vand.u32 %v24, 127
    %vm26 = vcmp.ge.s32.totalorder %v25, 0
    %vm27 = vcmp.lt.s32.totalorder %v25, 32
    %vm28 = vmand %vm26, %vm27
    %v29 = vsel %vm28, %v23, -inf
    %vm30 = vcmask 1043456
    %v31 = vsel %vm30, %v29, -inf
    %32 = vmax.xlane.f32.xlu0 %v31
    %v33 = vpop.xlane.xlu0 %32
    %vm34 = vcmp.ne.f32.partialorder %v33, %v33
    %v35 = vsel %vm34, 0.0, %v33
    %vm36 = vcmp.eq.f32.partialorder %v35, inf
    %v37 = vsel %vm36, 3.4028235e+38, %v35
    %vm38 = vcmp.eq.f32.partialorder %v37, -inf
    %v39 = vsel %vm38, 0.0, %v37
    %v40 = vsel %vm28, %v39, 0.0
    %vm41 = vcmp.ge.s32.totalorder %v25, 32
    %vm42 = vcmp.lt.s32.totalorder %v25, 64
    %vm43 = vmand %vm41, %vm42
    %v44 = vsel %vm43, %v23, -inf
    %v45 = vsel %vm30, %v44, -inf
    %46 = vmax.xlane.f32.xlu0 %v45
    %v47 = vpop.xlane.xlu0 %46
    %vm48 = vcmp.ne.f32.partialorder %v47, %v47
    %v49 = vsel %vm48, 0.0, %v47
    %vm50 = vcmp.eq.f32.partialorder %v49, inf
    %v51 = vsel %vm50, 3.4028235e+38, %v49
    %vm52 = vcmp.eq.f32.partialorder %v51, -inf
    %v53 = vsel %vm52, 0.0, %v51
    %v54 = vsel %vm43, %v53, %v40
    %vm55 = vcmp.ge.s32.totalorder %v25, 64
    %vm56 = vcmp.lt.s32.totalorder %v25, 96
    %vm57 = vmand %vm55, %vm56
    %v58 = vsel %vm57, %v23, -inf
    %v59 = vsel %vm30, %v58, -inf
    %60 = vmax.xlane.f32.xlu0 %v59
    %v61 = vpop.xlane.xlu0 %60
    %vm62 = vcmp.ne.f32.partialorder %v61, %v61
    %v63 = vsel %vm62, 0.0, %v61
    %vm64 = vcmp.eq.f32.partialorder %v63, inf
    %v65 = vsel %vm64, 3.4028235e+38, %v63
    %vm66 = vcmp.eq.f32.partialorder %v65, -inf
    %v67 = vsel %vm66, 0.0, %v65
    %v68 = vsel %vm57, %v67, %v54
    %vm69 = vcmp.ge.s32.totalorder %v25, 96
    %vm70 = vcmp.lt.s32.totalorder %v25, 128
    %vm71 = vmand %vm69, %vm70
    %v72 = vsel %vm71, %v23, -inf
    %v73 = vsel %vm30, %v72, -inf
    %74 = vmax.xlane.f32.xlu0 %v73
    %v75 = vpop.xlane.xlu0 %74
    %vm76 = vcmp.ne.f32.partialorder %v75, %v75
    %v77 = vsel %vm76, 0.0, %v75
    %vm78 = vcmp.eq.f32.partialorder %v77, inf
    %v79 = vsel %vm78, 3.4028235e+38, %v77
    %vm80 = vcmp.eq.f32.partialorder %v79, -inf
    %v81 = vsel %vm80, 0.0, %v79
    %v82 = vsel %vm71, %v81, %v68
    %v83 = vsub.f32 %v23, %v82
    %v84 = vmul.f32 %v83, 1.442695
    %v85 = vpow.pop %v84
    %v86 = vsel %vm28, %v85, 0.0
    %v87 = vsel %vm30, %v86, 0.0
    %88 = vadd.xlane.f32.xlu0 %v87
    %v89 = vpop.xlane.xlu0 %88
    %v90 = vadd.f32 %v89, 1e-07
    %v91 = vrcp.pop %v90
    %v92 = vmul.f32 %v90, %v91
    %v93 = vsub.f32 1.0, %v92
    %v94 = vmul.f32 %v91, %v93
    %v95 = vadd.f32 %v91, %v94
    %vm96 = vweird.f32 %v90
    %vm97 = vweird.f32 %v91
    %vm98 = vmor %vm96, %vm97
    %v99 = vsel %vm98, %v91, %v95
    %v100 = vand.u32 2147483647, %v90
    %vm101 = vcmp.eq.f32.partialorder %v100, 8.507059e+37
    %v102 = vand.u32 %v90, 2147483648
    %v103 = vor.u32 1.1754944e-38, %v102
    %v104 = vsel %vm101, %v103, %v99
    %v105 = vsel %vm28, %v104, 0.0
    %v106 = vsel %vm43, %v85, 0.0
    %v107 = vsel %vm30, %v106, 0.0
    %108 = vadd.xlane.f32.xlu0 %v107
    %v109 = vpop.xlane.xlu0 %108
    %v110 = vadd.f32 %v109, 1e-07
    %v111 = vrcp.pop %v110
    %v112 = vmul.f32 %v110, %v111
    %v113 = vsub.f32 1.0, %v112
    %v114 = vmul.f32 %v111, %v113
    %v115 = vadd.f32 %v111, %v114
    %vm116 = vweird.f32 %v110
    %vm117 = vweird.f32 %v111
    %vm118 = vmor %vm116, %vm117
    %v119 = vsel %vm118, %v111, %v115
    %v120 = vand.u32 2147483647, %v110
    %vm121 = vcmp.eq.f32.partialorder %v120, 8.507059e+37
    %v122 = vand.u32 %v110, 2147483648
    %v123 = vor.u32 1.1754944e-38, %v122
    %v124 = vsel %vm121, %v123, %v119
    %v125 = vsel %vm43, %v124, %v105
    %v126 = vsel %vm57, %v85, 0.0
    %v127 = vsel %vm30, %v126, 0.0
    %128 = vadd.xlane.f32.xlu0 %v127
    %v129 = vpop.xlane.xlu0 %128
    %v130 = vadd.f32 %v129, 1e-07
    %v131 = vrcp.pop %v130
    %v132 = vmul.f32 %v130, %v131
    %v133 = vsub.f32 1.0, %v132
    %v134 = vmul.f32 %v131, %v133
    %v135 = vadd.f32 %v131, %v134
    %vm136 = vweird.f32 %v130
    %vm137 = vweird.f32 %v131
    %vm138 = vmor %vm136, %vm137
    %v139 = vsel %vm138, %v131, %v135
    %v140 = vand.u32 2147483647, %v130
    %vm141 = vcmp.eq.f32.partialorder %v140, 8.507059e+37
    %v142 = vand.u32 %v130, 2147483648
    %v143 = vor.u32 1.1754944e-38, %v142
    %v144 = vsel %vm141, %v143, %v139
    %v145 = vsel %vm57, %v144, %v125
    %v146 = vsel %vm71, %v85, 0.0
    %v147 = vsel %vm30, %v146, 0.0
    %148 = vadd.xlane.f32.xlu0 %v147
    %v149 = vpop.xlane.xlu0 %148
    %v150 = vadd.f32 %v149, 1e-07
    %v151 = vrcp.pop %v150
    %v152 = vmul.f32 %v150, %v151
    %v153 = vsub.f32 1.0, %v152
    %v154 = vmul.f32 %v151, %v153
    %v155 = vadd.f32 %v151, %v154
    %vm156 = vweird.f32 %v150
    %vm157 = vweird.f32 %v151
    %vm158 = vmor %vm156, %vm157
    %v159 = vsel %vm158, %v151, %v155
    %v160 = vand.u32 2147483647, %v150
    %vm161 = vcmp.eq.f32.partialorder %v160, 8.507059e+37
    %v162 = vand.u32 %v150, 2147483648
    %v163 = vor.u32 1.1754944e-38, %v162
    %v164 = vsel %vm161, %v163, %v159
    %v165 = vsel %vm71, %v164, %v145
    %v166 = vmul.f32 %v85, %v165
    %167 = vst [vmem:[#allocation5] sm:$0xf] %v166
    // Predicated region
    $region10: #{tpu_custom_call.1} parent=1 // pred_check
      _
    $region11: #{tpu_custom_call.1} parent=1 // pred_check_branch
      %169 = sbr.rel (0) target = $region13
    $region12: #{tpu_custom_call.1} parent=1 // pred_region
      %171 = vsyncadd [#allocation4], 0
      %s173 = sshll.u32 [#allocation5], 4
      %s174 = int_to_ptr.vmem [resolvable:$true] %s173
      %s175 = sshll.u32 %s1, 4
      %s176 = int_to_ptr.hbm [resolvable:$true] %s175
      %178 = dma.vmem_to_hbm [thread:$0]  %s174, 64, %s176, [#allocation4]
    $region13: #{tpu_custom_call.1} parent=1 // pred_fallthru
      _
    // Predicated region
    $region14: #{tpu_custom_call.1} parent=1 // pred_check
      _
    $region15: #{tpu_custom_call.1} parent=1 // pred_check_branch
      %180 = sbr.rel (0) target = $region17
    $region16: #{tpu_custom_call.1} parent=1 // pred_region
      %182 = dma.done [#allocation4], 64
    $region17: #{tpu_custom_call.1} parent=1 // pred_fallthru
      _
    %183 = vsyncpa [#allocation3], 1
    %184 = vsyncpa [#allocation4], 1

</llo_original>
